<compile_context>
chip_gen: v7x
topology: tpu7x:2x2x1
jax: 0.10.0
libtpu: 0.0.40
codegen_flags: <defaults>
</compile_context>

<pallas_src>
import math

import jax
import jax.numpy as jnp
from jax import lax
from jax.experimental import pallas as pl
from jax.experimental.pallas import tpu as pltpu


# ----------------------------- kernel -----------------------------
def _qffn_kernel(x_ref, w1_ref, b1_ref, mb_ref, w2_ref, b2_ref, o_ref):
    f32 = jnp.float32
    bf16 = jnp.bfloat16
    Hp = mb_ref.shape[-1]  # lane-aligned hidden plane width (multiple of 128)

    # fc1: one (tm, 4E) x (4E, 4Hp) MXU matmul; x cast to bf16 in-kernel, f32 accumulation.
    x = x_ref[...].astype(bf16)
    h = jnp.dot(x, w1_ref[...], preferred_element_type=f32) + b1_ref[...]

    # ModReLU. Hidden columns are plane layout [r | i | j | k]; each plane is Hp wide and
    # lane aligned, so these slices are free (no cross-lane work).
    hr = h[:, 0 * Hp:1 * Hp]
    hi = h[:, 1 * Hp:2 * Hp]
    hj = h[:, 2 * Hp:3 * Hp]
    hk = h[:, 3 * Hp:4 * Hp]
    sumsq = hr * hr + hi * hi + hj * hj + hk * hk
    rs = lax.rsqrt(sumsq + 1e-12)                 # single EUP op (was sqrt + reciprocal)
    norm = sumsq * rs                             # ~ ||h||
    scale = jnp.maximum(norm + mb_ref[...], 0.0) * rs   # relu(norm + b) / norm

    # Per-plane scale + per-plane bf16 cast; concat of lane-aligned bf16 planes is plain
    # vreg placement (no f32 scale4 temporary, no masked copies).
    h_act = jnp.concatenate(
        [(hr * scale).astype(bf16), (hi * scale).astype(bf16),
         (hj * scale).astype(bf16), (hk * scale).astype(bf16)], axis=-1)

    # fc2: one (tm, 4Hp) x (4Hp, 4E) MXU matmul; single lane-dense output slab.
    out = jnp.dot(h_act, w2_ref[...], preferred_element_type=f32) + b2_ref[...]
    o_ref[...] = out.astype(o_ref.dtype)


# ----------------------------- wrapper helpers -----------------------------
def _round_up(x, m):
    return ((x + m - 1) // m) * m


def _hamilton_block(wr, wi, wj, wk):
    """Real block matrix of the quaternion linear map.

    Inputs: PyTorch-layout weights (out, in). Returns (4*in, 4*out) with rows = input
    component planes [r|i|j|k] and cols = output component planes [r|i|j|k] such that
    [r i j k] @ block == quaternion linear (pre-bias).
    """
    r, i, j, k = wr.T, wi.T, wj.T, wk.T  # (in, out)
    row_r = jnp.concatenate([r, i, j, k], axis=1)
    row_i = jnp.concatenate([-i, r, -k, j], axis=1)
    row_j = jnp.concatenate([-j, k, r, -i], axis=1)
    row_k = jnp.concatenate([-k, -j, i, r], axis=1)
    return jnp.concatenate([row_r, row_i, row_j, row_k], axis=0)


def fuse_qffn_params(params):
    """One-time fusion of quaternion weights into MXU-ready bf16 block matrices.

    Build this ONCE (e.g. at model load) and reuse across calls: rebuilding per call
    costs ~32*E*H bytes of HBM traffic plus a dozen transpose/concat ops.
    """
    H, E = params["w1_r"].shape
    Hp = _round_up(H, 128)  # lane-align each hidden plane

    # fc1: (4E, 4H) plane/plane block -> pad hidden planes to Hp -> rows interleaved (e,q).
    w1 = _hamilton_block(params["w1_r"], params["w1_i"], params["w1_j"], params["w1_k"])
    w1 = w1.reshape(4 * E, 4, H)
    w1 = jnp.pad(w1, ((0, 0), (0, 0), (0, Hp - H))).reshape(4 * E, 4 * Hp)
    w1 = w1.reshape(4, E, 4 * Hp).transpose(1, 0, 2).reshape(4 * E, 4 * Hp)
    w1 = w1.astype(jnp.bfloat16)

    # fc2: (4H, 4E) plane/plane block -> pad hidden-plane rows to Hp -> cols interleaved (e,q).
    w2 = _hamilton_block(params["w2_r"], params["w2_i"], params["w2_j"], params["w2_k"])
    w2 = w2.reshape(4, H, 4 * E)
    w2 = jnp.pad(w2, ((0, 0), (0, Hp - H), (0, 0))).reshape(4 * Hp, 4 * E)
    w2 = w2.reshape(4 * Hp, 4, E).transpose(0, 2, 1).reshape(4 * Hp, 4 * E)
    w2 = w2.astype(jnp.bfloat16)

    b1 = jnp.pad(params["b1"].T.astype(jnp.float32), ((0, 0), (0, Hp - H))).reshape(1, 4 * Hp)
    mb = jnp.pad(params["modrelu_bias"].astype(jnp.float32), (0, Hp - H)).reshape(1, Hp)
    b2 = params["b2"].astype(jnp.float32).reshape(1, 4 * E)

    return {"w1": w1, "b1": b1, "mb": mb, "w2": w2, "b2": b2, "E": E, "H": H, "Hp": Hp}


def _vmem_limit_bytes():
    try:
        cap = getattr(pltpu.get_tpu_info(), "vmem_capacity_bytes", None)
    except Exception:
        cap = None
    if not cap:
        cap = 64 * 1024 * 1024  # conservative fallback (v7x per-TC VMEM)
    # Never ask for the full physical VMEM: leave headroom for compiler scratch and the
    # double-buffered activation tiles.
    return min(int(cap * 0.85), 112 * 1024 * 1024)


def _const_spec(shape):
    """BlockSpec for a grid-invariant operand: single-buffered (index_map is constant,
    so the default double buffer only wastes VMEM)."""
    idx = lambda m: (0,) * len(shape)
    try:
        return pl.BlockSpec(shape, idx, pipeline_mode=pl.Buffered(1))
    except TypeError:  # older jax without pipeline_mode
        return pl.BlockSpec(shape, idx)


# ----------------------------- public entry points -----------------------------
def quaternion_feed_forward_pallas(x, fused, *, block_m=512, out_dtype=jnp.float32):
    """x: (B, S, E, 4) float32; `fused` from fuse_qffn_params(). Returns (B, S, E, 4)."""
    B, S, E, Q = x.shape
    assert Q == 4 and E == fused["E"]
    Hp = fused["Hp"]
    M = B * S

    # Activations: contiguous reshape only; bf16 cast happens inside the kernel so the
    # (M, 4E) slab crosses HBM exactly once as f32.
    x_flat = x.reshape(M, 4 * E)

    # Keep M a multiple of 8 (sublane alignment); partial last tiles beyond that are
    # masked by Pallas, so no full-size wrapper pad is needed.
    M_pad = _round_up(M, 8)
    if M_pad != M:
        x_flat = jnp.pad(x_flat, ((0, M_pad - M), (0, 0)))

    # --- M tiling: biggest tile up to block_m; prefer >= 2 grid steps (v7x has 2 TCs) ---
    tm = max(8, min(block_m, M_pad))
    tm = _round_up(tm, 8)
    if pl.cdiv(M_pad, tm) < 2 and M_pad > 8:
        tm = _round_up(pl.cdiv(M_pad, 2), 8)
    grid = (pl.cdiv(M_pad, tm),)

    out = pl.pallas_call(
        _qffn_kernel,
        out_shape=jax.ShapeDtypeStruct((M_pad, 4 * E), out_dtype),
        grid_spec=pltpu.PrefetchScalarGridSpec(
            num_scalar_prefetch=0,
            grid=grid,
            in_specs=[
                pl.BlockSpec((tm, 4 * E), lambda m: (m, 0)),   # x tile (f32; cast in kernel)
                _const_spec((4 * E, 4 * Hp)),                  # fused fc1 weight (bf16)
                _const_spec((1, 4 * Hp)),                      # fc1 bias (f32, plane layout)
                _const_spec((1, Hp)),                          # ModReLU bias (f32)
                _const_spec((4 * Hp, 4 * E)),                  # fused fc2 weight (bf16)
                _const_spec((1, 4 * E)),                       # fc2 bias (f32, interleaved)
            ],
            out_specs=pl.BlockSpec((tm, 4 * E), lambda m: (m, 0)),
        ),
        compiler_params=pltpu.CompilerParams(
            dimension_semantics=("parallel",),
            vmem_limit_bytes=_vmem_limit_bytes(),
        ),
    )(x_flat, fused["w1"], fused["b1"], fused["mb"], fused["w2"], fused["b2"])

    if M_pad != M:
        out = out[:M]
    return out.reshape(B, S, E, 4)


def quaternion_feed_forward(x, params, **kwargs):
    """Convenience one-shot entry point (fuses weights per call; prefer caching fused)."""
    return quaternion_feed_forward_pallas(x, fuse_qffn_params(params), **kwargs)


# ----------------------- reference (pure JAX, f32) for validation -----------------------
def _quaternion_linear_ref(x, wr, wi, wj, wk, bias):
    r, i, j, k = x[..., 0], x[..., 1], x[..., 2], x[..., 3]
    lin = lambda a, w: a @ w.T
    r_out = lin(r, wr) - lin(i, wi) - lin(j, wj) - lin(k, wk)
    i_out = lin(r, wi) + lin(i, wr) + lin(j, wk) - lin(k, wj)
    j_out = lin(r, wj) - lin(i, wk) + lin(j, wr) + lin(k, wi)
    k_out = lin(r, wk) + lin(i, wj) - lin(j, wi) + lin(k, wr)
    out = jnp.stack([r_out, i_out, j_out, k_out], axis=-1)
    return out + bias[None, None, :, :]


def _modrelu_ref(x, bias):
    norm = jnp.sqrt(jnp.sum(x * x, axis=-1))
    scale = jax.nn.relu(norm + bias[None, None, :])
    scale = scale / (norm + 1e-6)
    return x * scale[..., None]


def quaternion_feed_forward_ref(x, p):
    h = _quaternion_linear_ref(x, p["w1_r"], p["w1_i"], p["w1_j"], p["w1_k"], p["b1"])
    h = _modrelu_ref(h, p["modrelu_bias"])
    return _quaternion_linear_ref(h, p["w2_r"], p["w2_i"], p["w2_j"], p["w2_k"], p["b2"])


# ----------------------- deterministic parameter init -----------------------
def _xavier_uniform(key, out_f, in_f):
    bound = math.sqrt(6.0 / (in_f + out_f))
    return jax.random.uniform(key, (out_f, in_f), jnp.float32, -bound, bound)


def init_params(key, embedding_dim, hidden_dim):
    keys = jax.random.split(key, 8)
    E, H = embedding_dim, hidden_dim
    return {
        "w1_r": _xavier_uniform(keys[0], H, E),
        "w1_i": _xavier_uniform(keys[1], H, E),
        "w1_j": _xavier_uniform(keys[2], H, E),
        "w1_k": _xavier_uniform(keys[3], H, E),
        "b1": jnp.zeros((H, 4), jnp.float32),
        "modrelu_bias": jnp.zeros((H,), jnp.float32),
        "w2_r": _xavier_uniform(keys[4], E, H),
        "w2_i": _xavier_uniform(keys[5], E, H),
        "w2_j": _xavier_uniform(keys[6], E, H),
        "w2_k": _xavier_uniform(keys[7], E, H),
        "b2": jnp.zeros((E, 4), jnp.float32),
    }


if __name__ == "__main__":
    B, S, E, H = 2, 8, 32, 64
    key = jax.random.PRNGKey(0)
    k_x, k_p, k_m = jax.random.split(key, 3)
    x = jax.random.normal(k_x, (B, S, E, 4), jnp.float32)
    params = init_params(k_p, E, H)
    # Non-trivial ModReLU bias so both ReLU branches are exercised.
    params["modrelu_bias"] = jax.random.uniform(k_m, (H,), jnp.float32, -4.0, 0.5)

    # One-time weight fusion (cache this across calls in real use).
    fused = fuse_qffn_params(params)

    y = quaternion_feed_forward_pallas(x, fused)
    y = jax.block_until_ready(y)

    y_ref = quaternion_feed_forward_ref(x, params)
    assert y.shape == (B, S, E, 4)

    # bf16 matmuls with f32 accumulation: check relative-to-scale max error.
    max_err = float(jnp.max(jnp.abs(y - y_ref)))
    ref_scale = float(jnp.max(jnp.abs(y_ref))) + 1e-6
    assert max_err <= 2e-2 * ref_scale, f"mismatch vs reference: max_err={max_err}, scale={ref_scale}"

    print("KERNEL_OK")
</pallas_src>

<mosaic_0001>
module attributes {stable_mosaic.version = 11 : i64} {
  func.func @_qffn_kernel(%arg0: i32, %arg1: memref<8x128xf32, #tpu.memory_space<vmem>>, %arg2: memref<128x512xbf16, #tpu.memory_space<vmem>>, %arg3: memref<1x512xf32, #tpu.memory_space<vmem>>, %arg4: memref<1x128xf32, #tpu.memory_space<vmem>>, %arg5: memref<512x128xbf16, #tpu.memory_space<vmem>>, %arg6: memref<1x128xf32, #tpu.memory_space<vmem>>, %arg7: memref<8x128xf32, #tpu.memory_space<vmem>>) attributes {dimension_semantics = [#tpu.dimension_semantics<parallel>], iteration_bounds = array<i64: 2>, scalar_prefetch = 0 : i64, scratch_operands = 0 : i64, tpu.core_type = #tpu.core_type<tc>, window_params = [{transform_indices = @transform_0, window_bounds = array<i64: 8, 128>}, {pipeline_mode = #tpu.pipeline_mode<synchronous>, transform_indices = @transform_1, window_bounds = array<i64: 128, 512>}, {pipeline_mode = #tpu.pipeline_mode<synchronous>, transform_indices = @transform_2, window_bounds = array<i64: 1, 512>}, {pipeline_mode = #tpu.pipeline_mode<synchronous>, transform_indices = @transform_3, window_bounds = array<i64: 1, 128>}, {pipeline_mode = #tpu.pipeline_mode<synchronous>, transform_indices = @transform_4, window_bounds = array<i64: 512, 128>}, {pipeline_mode = #tpu.pipeline_mode<synchronous>, transform_indices = @transform_5, window_bounds = array<i64: 1, 128>}, {transform_indices = @transform_6, window_bounds = array<i64: 8, 128>}]} {
    %c0 = arith.constant 0 : index
    %c0_0 = arith.constant 0 : index
    %0 = vector.load %arg1[%c0, %c0_0] : memref<8x128xf32, #tpu.memory_space<vmem>>, vector<8x128xf32>
    %1 = arith.truncf %0 : vector<8x128xf32> to vector<8x128xbf16>
    %c0_1 = arith.constant 0 : index
    %c0_2 = arith.constant 0 : index
    %2 = vector.load %arg2[%c0_1, %c0_2] : memref<128x512xbf16, #tpu.memory_space<vmem>>, vector<128x512xbf16>
    %cst = arith.constant dense<0.000000e+00> : vector<8x512xf32>
    %3 = tpu.matmul %1, %2, %cst {dimension_numbers = #tpu.dot_dimension_numbers<[1], [0], [0], [1], [0, 0, 1, 1], [], []>} : vector<8x128xbf16>, vector<128x512xbf16>, vector<8x512xf32> -> vector<8x512xf32>
    %c0_3 = arith.constant 0 : index
    %c0_4 = arith.constant 0 : index
    %4 = vector.load %arg3[%c0_3, %c0_4] : memref<1x512xf32, #tpu.memory_space<vmem>>, vector<1x512xf32>
    %5 = vector.broadcast %4 : vector<1x512xf32> to vector<8x512xf32>
    %6 = arith.addf %3, %5 : vector<8x512xf32>
    %7 = vector.extract_strided_slice %6 {offsets = [0, 0], sizes = [8, 128], strides = [1, 1]} : vector<8x512xf32> to vector<8x128xf32>
    %8 = vector.extract_strided_slice %6 {offsets = [0, 128], sizes = [8, 128], strides = [1, 1]} : vector<8x512xf32> to vector<8x128xf32>
    %9 = vector.extract_strided_slice %6 {offsets = [0, 256], sizes = [8, 128], strides = [1, 1]} : vector<8x512xf32> to vector<8x128xf32>
    %10 = vector.extract_strided_slice %6 {offsets = [0, 384], sizes = [8, 128], strides = [1, 1]} : vector<8x512xf32> to vector<8x128xf32>
    %11 = arith.mulf %7, %7 : vector<8x128xf32>
    %12 = arith.mulf %8, %8 : vector<8x128xf32>
    %13 = arith.addf %11, %12 : vector<8x128xf32>
    %14 = arith.mulf %9, %9 : vector<8x128xf32>
    %15 = arith.addf %13, %14 : vector<8x128xf32>
    %16 = arith.mulf %10, %10 : vector<8x128xf32>
    %17 = arith.addf %15, %16 : vector<8x128xf32>
    %cst_5 = arith.constant 9.99999996E-13 : f32
    %18 = vector.broadcast %cst_5 : f32 to vector<8x128xf32>
    %19 = arith.addf %17, %18 : vector<8x128xf32>
    %20 = math.rsqrt %19 : vector<8x128xf32>
    %21 = arith.mulf %17, %20 : vector<8x128xf32>
    %c0_6 = arith.constant 0 : index
    %c0_7 = arith.constant 0 : index
    %22 = vector.load %arg4[%c0_6, %c0_7] : memref<1x128xf32, #tpu.memory_space<vmem>>, vector<1x128xf32>
    %23 = vector.broadcast %22 : vector<1x128xf32> to vector<8x128xf32>
    %24 = arith.addf %21, %23 : vector<8x128xf32>
    %cst_8 = arith.constant 0.000000e+00 : f32
    %25 = vector.broadcast %cst_8 : f32 to vector<8x128xf32>
    %26 = arith.maximumf %24, %25 : vector<8x128xf32>
    %27 = arith.mulf %26, %20 : vector<8x128xf32>
    %28 = arith.mulf %7, %27 : vector<8x128xf32>
    %29 = arith.truncf %28 : vector<8x128xf32> to vector<8x128xbf16>
    %30 = arith.mulf %8, %27 : vector<8x128xf32>
    %31 = arith.truncf %30 : vector<8x128xf32> to vector<8x128xbf16>
    %32 = arith.mulf %9, %27 : vector<8x128xf32>
    %33 = arith.truncf %32 : vector<8x128xf32> to vector<8x128xbf16>
    %34 = arith.mulf %10, %27 : vector<8x128xf32>
    %35 = arith.truncf %34 : vector<8x128xf32> to vector<8x128xbf16>
    %36 = tpu.concatenate %29, %31, %33, %35 in 1 : vector<8x128xbf16>, vector<8x128xbf16>, vector<8x128xbf16>, vector<8x128xbf16> -> vector<8x512xbf16>
    %c0_9 = arith.constant 0 : index
    %c0_10 = arith.constant 0 : index
    %37 = vector.load %arg5[%c0_9, %c0_10] : memref<512x128xbf16, #tpu.memory_space<vmem>>, vector<512x128xbf16>
    %cst_11 = arith.constant dense<0.000000e+00> : vector<8x128xf32>
    %38 = tpu.matmul %36, %37, %cst_11 {dimension_numbers = #tpu.dot_dimension_numbers<[1], [0], [0], [1], [0, 0, 1, 1], [], []>} : vector<8x512xbf16>, vector<512x128xbf16>, vector<8x128xf32> -> vector<8x128xf32>
    %c0_12 = arith.constant 0 : index
    %c0_13 = arith.constant 0 : index
    %39 = vector.load %arg6[%c0_12, %c0_13] : memref<1x128xf32, #tpu.memory_space<vmem>>, vector<1x128xf32>
    %40 = vector.broadcast %39 : vector<1x128xf32> to vector<8x128xf32>
    %41 = arith.addf %38, %40 : vector<8x128xf32>
    %c0_14 = arith.constant 0 : index
    %c0_15 = arith.constant 0 : index
    %42 = vector.load %arg7[%c0_14, %c0_15] : memref<8x128xf32, #tpu.memory_space<vmem>>, vector<8x128xf32>
    tpu.vector_store %arg7[%c0_14, %c0_15], %41 {strides = array<i32>} : memref<8x128xf32, #tpu.memory_space<vmem>>, vector<8x128xf32>,
    return
  }
  func.func @transform_0(%arg0: i32) -> (i32, i32) {
    %c0_i32 = arith.constant 0 : i32
    %c0_i32_0 = arith.constant 0 : i32
    return %arg0, %c0_i32 : i32, i32
  }
  func.func @transform_1(%arg0: i32) -> (i32, i32) {
    %c0_i32 = arith.constant 0 : i32
    %c0_i32_0 = arith.constant 0 : i32
    %c0_i32_1 = arith.constant 0 : i32
    return %c0_i32, %c0_i32_0 : i32, i32
  }
  func.func @transform_2(%arg0: i32) -> (i32, i32) {
    %c0_i32 = arith.constant 0 : i32
    %c0_i32_0 = arith.constant 0 : i32
    %c0_i32_1 = arith.constant 0 : i32
    return %c0_i32, %c0_i32_0 : i32, i32
  }
  func.func @transform_3(%arg0: i32) -> (i32, i32) {
    %c0_i32 = arith.constant 0 : i32
    %c0_i32_0 = arith.constant 0 : i32
    %c0_i32_1 = arith.constant 0 : i32
    return %c0_i32, %c0_i32_0 : i32, i32
  }
  func.func @transform_4(%arg0: i32) -> (i32, i32) {
    %c0_i32 = arith.constant 0 : i32
    %c0_i32_0 = arith.constant 0 : i32
    %c0_i32_1 = arith.constant 0 : i32
    return %c0_i32, %c0_i32_0 : i32, i32
  }
  func.func @transform_5(%arg0: i32) -> (i32, i32) {
    %c0_i32 = arith.constant 0 : i32
    %c0_i32_0 = arith.constant 0 : i32
    %c0_i32_1 = arith.constant 0 : i32
    return %c0_i32, %c0_i32_0 : i32, i32
  }
  func.func @transform_6(%arg0: i32) -> (i32, i32) {
    %c0_i32 = arith.constant 0 : i32
    %c0_i32_0 = arith.constant 0 : i32
    return %arg0, %c0_i32 : i32, i32
  }
}

</mosaic_0001>

<llo_original>
// kernel: tpu_custom_call.1
$region0: #{tpu_custom_call.1}
  #allocation0 [shape = 'u32[]', space=smem, size = 0x4, offset = 0x4, fixed_abs, tag = 'smem constant byte address 0x4 - core index']
  #allocation1 [shape = 'u32[144,128]{1,0:T(1,128)}', space=vmem, size = 0x12000, scoped, tag = 'internal scratch']
  %s0 = inlined_call_operand.hbm [shape: f32[16,128], index: 0, kind: input, shape index: {}]
  %s1 = inlined_call_operand.hbm [shape: bf16[128,512], index: 1, kind: input, shape index: {}]
  %s2 = inlined_call_operand.vmem [shape: f32[1,512], index: 2, kind: input, shape index: {}]
  %s3 = inlined_call_operand.vmem [shape: f32[1,128], index: 3, kind: input, shape index: {}]
  %s4 = inlined_call_operand.hbm [shape: bf16[512,128], index: 4, kind: input, shape index: {}]
  %s5 = inlined_call_operand.vmem [shape: f32[1,128], index: 5, kind: input, shape index: {}]
  %s6 = inlined_call_operand.hbm [shape: f32[16,128], index: 6, kind: output, shape index: {}]
  %s7 = sld [smem:[#allocation0]]
  $region69: #{tpu_custom_call.1} parent=0
    _
  %s9 = ssub.s32 1, %s7
  %s10 = scalar_select 0, %s9, %s7
  $region1: #{tpu_custom_call.1} parent=0
    #allocation2 [shape = 'u8[8192]{0}', space=vmem, size = 0x2000, scoped, tag = 'input window, operand 0']
    #allocation3 [shape = 's32[2]{0}', space=sflag, size = 0x8, scoped, tag = 'scoped memory for tpu_custom_call.1']
    #allocation4 [shape = 's32[2]{0}', space=sflag, size = 0x8, scoped, tag = 'scoped memory for tpu_custom_call.1']
    #allocation5 [shape = 'u8[131072]{0}', space=vmem, size = 0x20000, scoped, tag = 'input window, operand 1, single buffered']
    #allocation6 [shape = 's32[1]{0}', space=sflag, size = 0x4, scoped, tag = 'scoped memory for tpu_custom_call.1']
    #allocation7 [shape = 'u8[131072]{0}', space=vmem, size = 0x20000, scoped, tag = 'input window, operand 4, single buffered']
    #allocation8 [shape = 'u8[8192]{0}', space=vmem, size = 0x2000, scoped, tag = 'output window, operand 0']
    %11 = vsyncpa [#allocation3], 0
    %s12 = scalar_lea.sflag [#allocation3], 1
    %13 = vsyncpa %s12, 0
    %14 = vsyncpa [#allocation6], 0
    %15 = vsyncpa [#allocation4], 0
    %s16 = scalar_lea.sflag [#allocation4], 1
    %17 = vsyncpa %s16, 0
    loop: start=0, step=1, limit=4
    $region2: #{tpu_custom_call.1} parent=1 // loop_pre_header
      _
    $region3: #{tpu_custom_call.1} parent=1 // loop_header
      %s19 = sphi 0, %s23
      %p20 = scmp.ge.s32.totalorder %s19, 4
      %s29 = sphi 0, %s31
      %s32 = sphi 0, %s29
      %s33 = sphi 0, %s32
      %s49 = sphi 0, %s33
      %s53 = sphi 0, %s53
      %s55 = sphi 0, %s53
      %s56 = sphi 0, %s55
      %s70 = sphi 0, %s56
      %s74 = sphi 0, %s74
      %s76 = sphi 0, %s74
      %s77 = sphi 0, %s76
      %s91 = sphi 0, %s77
      %s95 = sphi 0, %s95
      %s97 = sphi 0, %s95
      %s98 = sphi 0, %s97
      %s112 = sphi 0, %s98
      %s116 = sphi 0, %s116
      %s118 = sphi 0, %s116
      %s119 = sphi 0, %s118
      %s133 = sphi 0, %s119
      %s137 = sphi 0, %s137
      %s139 = sphi 0, %s137
      %s140 = sphi 0, %s139
      %s154 = sphi 0, %s140
      %s160 = sphi 0, %s162
      %s163 = sphi 0, %s160
      %s164 = sphi 0, %s163
      %s180 = sphi 0, %s164
    $region4: #{tpu_custom_call.1} parent=1 // loop_header_branch
      %22 = sbr.rel (%p20) target = $region8
    $region5: #{tpu_custom_call.1} parent=1 // loop_body
      %s24 = ssub.s32 %s19, 1
      %s25 = ssub.s32 %s19, 2
      %s26 = sadd.s32 %s19, 1
      %s27 = ssub.s32 %s19, %s26
      %p28 = scmp.eq.s32.totalorder %s27, 0
      %s30 = sadd.s32 %s29, 1
      %s31 = scalar_select %p28, %s29, %s30
      %p34 = pneg %p28
      %p35 = scmp.eq.s32.totalorder %s19, 1
      %p36 = por %p34, %p35
      %p37 = scmp.ne.s32.totalorder %s29, %s32
      %p38 = scmp.eq.s32.totalorder %s19, 0
      %p39 = por %p37, %p38
      %p40 = scmp.ne.s32.totalorder %s29, %s32
      %p41 = scmp.eq.s32.totalorder %s24, 1
      %p42 = por %p40, %p41
      %p43 = scmp.ne.s32.totalorder %s32, %s33
      %p44 = scmp.eq.s32.totalorder %s24, 0
      %p45 = por %p43, %p44
      %p46 = scmp.ne.s32.totalorder %s32, %s33
      %p47 = scmp.eq.s32.totalorder %s25, 1
      %p48 = por %p46, %p47
      %p50 = scmp.ne.s32.totalorder %s33, %s49
      %p51 = scmp.eq.s32.totalorder %s25, 0
      %p52 = por %p50, %p51
      %s54 = sadd.s32 %s53, 1
      %p57 = scmp.eq.s32.totalorder %s19, 1
      %p58 = scmp.ne.s32.totalorder %s53, %s55
      %p59 = scmp.eq.s32.totalorder %s19, 0
      %p60 = por %p58, %p59
      %p61 = scmp.ne.s32.totalorder %s53, %s55
      %p62 = scmp.eq.s32.totalorder %s24, 1
      %p63 = por %p61, %p62
      %p64 = scmp.ne.s32.totalorder %s55, %s56
      %p65 = scmp.eq.s32.totalorder %s24, 0
      %p66 = por %p64, %p65
      %p67 = scmp.ne.s32.totalorder %s55, %s56
      %p68 = scmp.eq.s32.totalorder %s25, 1
      %p69 = por %p67, %p68
      %p71 = scmp.ne.s32.totalorder %s56, %s70
      %p72 = scmp.eq.s32.totalorder %s25, 0
      %p73 = por %p71, %p72
      %s75 = sadd.s32 %s74, 1
      %p78 = scmp.eq.s32.totalorder %s19, 1
      %p79 = scmp.ne.s32.totalorder %s74, %s76
      %p80 = scmp.eq.s32.totalorder %s19, 0
      %p81 = por %p79, %p80
      %p82 = scmp.ne.s32.totalorder %s74, %s76
      %p83 = scmp.eq.s32.totalorder %s24, 1
      %p84 = por %p82, %p83
      %p85 = scmp.ne.s32.totalorder %s76, %s77
      %p86 = scmp.eq.s32.totalorder %s24, 0
      %p87 = por %p85, %p86
      %p88 = scmp.ne.s32.totalorder %s76, %s77
      %p89 = scmp.eq.s32.totalorder %s25, 1
      %p90 = por %p88, %p89
      %p92 = scmp.ne.s32.totalorder %s77, %s91
      %p93 = scmp.eq.s32.totalorder %s25, 0
      %p94 = por %p92, %p93
      %s96 = sadd.s32 %s95, 1
      %p99 = scmp.eq.s32.totalorder %s19, 1
      %p100 = scmp.ne.s32.totalorder %s95, %s97
      %p101 = scmp.eq.s32.totalorder %s19, 0
      %p102 = por %p100, %p101
      %p103 = scmp.ne.s32.totalorder %s95, %s97
      %p104 = scmp.eq.s32.totalorder %s24, 1
      %p105 = por %p103, %p104
      %p106 = scmp.ne.s32.totalorder %s97, %s98
      %p107 = scmp.eq.s32.totalorder %s24, 0
      %p108 = por %p106, %p107
      %p109 = scmp.ne.s32.totalorder %s97, %s98
      %p110 = scmp.eq.s32.totalorder %s25, 1
      %p111 = por %p109, %p110
      %p113 = scmp.ne.s32.totalorder %s98, %s112
      %p114 = scmp.eq.s32.totalorder %s25, 0
      %p115 = por %p113, %p114
      %s117 = sadd.s32 %s116, 1
      %p120 = scmp.eq.s32.totalorder %s19, 1
      %p121 = scmp.ne.s32.totalorder %s116, %s118
      %p122 = scmp.eq.s32.totalorder %s19, 0
      %p123 = por %p121, %p122
      %p124 = scmp.ne.s32.totalorder %s116, %s118
      %p125 = scmp.eq.s32.totalorder %s24, 1
      %p126 = por %p124, %p125
      %p127 = scmp.ne.s32.totalorder %s118, %s119
      %p128 = scmp.eq.s32.totalorder %s24, 0
      %p129 = por %p127, %p128
      %p130 = scmp.ne.s32.totalorder %s118, %s119
      %p131 = scmp.eq.s32.totalorder %s25, 1
      %p132 = por %p130, %p131
      %p134 = scmp.ne.s32.totalorder %s119, %s133
      %p135 = scmp.eq.s32.totalorder %s25, 0
      %p136 = por %p134, %p135
      %s138 = sadd.s32 %s137, 1
      %p141 = scmp.eq.s32.totalorder %s19, 1
      %p142 = scmp.ne.s32.totalorder %s137, %s139
      %p143 = scmp.eq.s32.totalorder %s19, 0
      %p144 = por %p142, %p143
      %p145 = scmp.ne.s32.totalorder %s137, %s139
      %p146 = scmp.eq.s32.totalorder %s24, 1
      %p147 = por %p145, %p146
      %p148 = scmp.ne.s32.totalorder %s139, %s140
      %p149 = scmp.eq.s32.totalorder %s24, 0
      %p150 = por %p148, %p149
      %p151 = scmp.ne.s32.totalorder %s139, %s140
      %p152 = scmp.eq.s32.totalorder %s25, 1
      %p153 = por %p151, %p152
      %p155 = scmp.ne.s32.totalorder %s140, %s154
      %p156 = scmp.eq.s32.totalorder %s25, 0
      %p157 = por %p155, %p156
      %s158 = ssub.s32 %s19, %s26
      %p159 = scmp.eq.s32.totalorder %s158, 0
      %s161 = sadd.s32 %s160, 1
      %s162 = scalar_select %p159, %s160, %s161
      %p165 = pneg %p159
      %p166 = scmp.eq.s32.totalorder %s19, 1
      %p167 = por %p165, %p166
      %p168 = scmp.ne.s32.totalorder %s160, %s163
      %p169 = scmp.eq.s32.totalorder %s19, 0
      %p170 = por %p168, %p169
      %p171 = scmp.ne.s32.totalorder %s160, %s163
      %p172 = scmp.eq.s32.totalorder %s24, 1
      %p173 = por %p171, %p172
      %p174 = scmp.ne.s32.totalorder %s163, %s164
      %p175 = scmp.eq.s32.totalorder %s24, 0
      %p176 = por %p174, %p175
      %p177 = scmp.ne.s32.totalorder %s163, %s164
      %p178 = scmp.eq.s32.totalorder %s25, 1
      %p179 = por %p177, %p178
      %p181 = scmp.ne.s32.totalorder %s164, %s180
      %p182 = scmp.eq.s32.totalorder %s25, 0
      %p183 = por %p181, %p182
      %p184 = scmp.le.s32.totalorder 1, %s19
      %p185 = scmp.lt.s32.totalorder %s19, 3
      %p186 = pnand %p184, %p185
      %p187 = pneg %p186
      // Predicated region
      $region9: #{tpu_custom_call.1} parent=5 // pred_check
        _
      $region10: #{tpu_custom_call.1} parent=5 // pred_check_branch
        %189 = sbr.rel (%p186) target = $region12
      $region11: #{tpu_custom_call.1} parent=5 // pred_region
        %s190 = ssub.s32 %s19, 1
        // Predicated region
        $region13: #{tpu_custom_call.1} parent=11 // pred_check
          %p191 = pneg %p66
        $region14: #{tpu_custom_call.1} parent=11 // pred_check_branch
          %193 = sbr.rel (%p191) target = $region16
        $region15: #{tpu_custom_call.1} parent=11 // pred_region
          %s195 = ssub.s32 4096, 4096
          %196 = vsyncadd [#allocation6], %s195
          %s197 = sshll.u32 [#allocation5], 4
          %s198 = int_to_ptr.vmem [resolvable:$true] %s197
          %203 = dma.hbm_to_vmem [thread:$0]  %s1, 4096, %s198, [#allocation6], 256, 256, 16
        $region16: #{tpu_custom_call.1} parent=11 // pred_fallthru
          _
        // Predicated region
        $region17: #{tpu_custom_call.1} parent=11 // pred_check
          %p204 = pneg %p87
        $region18: #{tpu_custom_call.1} parent=11 // pred_check_branch
          %206 = sbr.rel (%p204) target = $region20
        $region19: #{tpu_custom_call.1} parent=11 // pred_region
          _
        $region20: #{tpu_custom_call.1} parent=11 // pred_fallthru
          _
        // Predicated region
        $region21: #{tpu_custom_call.1} parent=11 // pred_check
          %p207 = pneg %p108
        $region22: #{tpu_custom_call.1} parent=11 // pred_check_branch
          %209 = sbr.rel (%p207) target = $region24
        $region23: #{tpu_custom_call.1} parent=11 // pred_region
          _
        $region24: #{tpu_custom_call.1} parent=11 // pred_fallthru
          _
        // Predicated region
        $region25: #{tpu_custom_call.1} parent=11 // pred_check
          %p210 = pneg %p129
        $region26: #{tpu_custom_call.1} parent=11 // pred_check_branch
          %212 = sbr.rel (%p210) target = $region28
        $region27: #{tpu_custom_call.1} parent=11 // pred_region
          %s214 = ssub.s32 4096, 4096
          %215 = vsyncadd [#allocation6], %s214
          %s216 = sshll.u32 [#allocation7], 4
          %s217 = int_to_ptr.vmem [resolvable:$true] %s216
          %222 = dma.hbm_to_vmem [thread:$0]  %s4, 4096, %s217, [#allocation6], 64, 64, 4
        $region28: #{tpu_custom_call.1} parent=11 // pred_fallthru
          _
        // Predicated region
        $region29: #{tpu_custom_call.1} parent=11 // pred_check
          %p223 = pneg %p150
        $region30: #{tpu_custom_call.1} parent=11 // pred_check_branch
          %225 = sbr.rel (%p223) target = $region32
        $region31: #{tpu_custom_call.1} parent=11 // pred_region
          _
        $region32: #{tpu_custom_call.1} parent=11 // pred_fallthru
          _
      $region12: #{tpu_custom_call.1} parent=5 // pred_fallthru
        _
      %p226 = scmp.lt.s32.totalorder %s19, 2
      // Predicated region
      $region33: #{tpu_custom_call.1} parent=5 // pred_check
        %p227 = pneg %p226
      $region34: #{tpu_custom_call.1} parent=5 // pred_check_branch
        %229 = sbr.rel (%p227) target = $region36
      $region35: #{tpu_custom_call.1} parent=5 // pred_region
        // Predicated region
        $region37: #{tpu_custom_call.1} parent=35 // pred_check
          %p230 = pneg %p39
        $region38: #{tpu_custom_call.1} parent=35 // pred_check_branch
          %232 = sbr.rel (%p230) target = $region40
        $region39: #{tpu_custom_call.1} parent=35 // pred_region
          %s233 = sand.u32 %s29, 1
          %s234 = scalar_lea.sflag [#allocation3], %s233
          %s235 = sand.u32 %s29, 1
          %s236 = smul.addr %s235, 8
          %s237 = scalar_lea.vmem [#allocation2], %s236
          %s239 = ssub.s32 128, 128
          %240 = vsyncadd %s234, %s239
          %s241 = smul.addr %s19, 128
          %s242 = scalar_lea.hbm %s0, %s241
          %s244 = sshll.u32 %s237, 4
          %s245 = int_to_ptr.vmem [resolvable:$true] %s244
          %247 = dma.hbm_to_vmem [thread:$0]  %s242, 128, %s245, %s234
        $region40: #{tpu_custom_call.1} parent=35 // pred_fallthru
          _
      $region36: #{tpu_custom_call.1} parent=5 // pred_fallthru
        _
      %p248 = scmp.le.s32.totalorder 1, %s19
      %p249 = scmp.lt.s32.totalorder %s19, 3
      %p250 = pnand %p248, %p249
      %p251 = pneg %p250
      // Predicated region
      $region41: #{tpu_custom_call.1} parent=5 // pred_check
        _
      $region42: #{tpu_custom_call.1} parent=5 // pred_check_branch
        %253 = sbr.rel (%p250) target = $region44
      $region43: #{tpu_custom_call.1} parent=5 // pred_region
        %s254 = ssub.s32 %s19, 1
        %s255 = sand.u32 %s32, 1
        %s256 = scalar_lea.sflag [#allocation3], %s255
        %s257 = sand.u32 %s32, 1
        %s258 = smul.addr %s257, 8
        %s259 = scalar_lea.vmem [#allocation2], %s258
        // Predicated region
        $region45: #{tpu_custom_call.1} parent=43 // pred_check
          %p260 = pneg %p45
        $region46: #{tpu_custom_call.1} parent=43 // pred_check_branch
          %262 = sbr.rel (%p260) target = $region48
        $region47: #{tpu_custom_call.1} parent=43 // pred_region
          %263 = dma.done %s256, 128
        $region48: #{tpu_custom_call.1} parent=43 // pred_fallthru
          _
        // Predicated region
        $region49: #{tpu_custom_call.1} parent=43 // pred_check
          %p264 = pneg %p66
        $region50: #{tpu_custom_call.1} parent=43 // pred_check_branch
          %266 = sbr.rel (%p264) target = $region52
        $region51: #{tpu_custom_call.1} parent=43 // pred_region
          %267 = dma.done [#allocation6], 4096
        $region52: #{tpu_custom_call.1} parent=43 // pred_fallthru
          _
        // Predicated region
        $region53: #{tpu_custom_call.1} parent=43 // pred_check
          %p268 = pneg %p129
        $region54: #{tpu_custom_call.1} parent=43 // pred_check_branch
          %270 = sbr.rel (%p268) target = $region56
        $region55: #{tpu_custom_call.1} parent=43 // pred_region
          %271 = dma.done [#allocation6], 4096
        $region56: #{tpu_custom_call.1} parent=43 // pred_fallthru
          _
        %s272 = sand.u32 %s32, 1
        %s273 = scalar_lea.sflag [#allocation3], %s272
        %s274 = sand.u32 %s32, 1
        %s275 = smul.addr %s274, 8
        %s276 = scalar_lea.vmem [#allocation2], %s275
        %p277 = pneg %p45
        %p278 = pneg %p42
        %p279 = pneg %p66
        %p280 = pneg %p63
        %p281 = pneg %p87
        %p282 = pneg %p84
        %p283 = pneg %p108
        %p284 = pneg %p105
        %p285 = pneg %p129
        %p286 = pneg %p126
        %p287 = pneg %p150
        %p288 = pneg %p147
        %p289 = pneg %p176
        %p290 = pneg %p173
        %s291 = sand.u32 %s163, 1
        %s292 = scalar_lea.sflag [#allocation4], %s291
        %s293 = sand.u32 %s163, 1
        %s294 = smul.addr %s293, 8
        %s295 = scalar_lea.vmem [#allocation8], %s294
        %v297 = vld [vmem:[%s259] sm:$0xff]
        %v298 = vpack.c.bf16 %v297, %v297
        %v299 = vld [vmem:[#allocation5] sm:$0xff]
        %v300 = vld [vmem:[#allocation5 + $0x8] sm:$0xff]
        %v301 = vld [vmem:[#allocation5 + $0x10] sm:$0xff]
        %v302 = vld [vmem:[#allocation5 + $0x18] sm:$0xff]
        %v303 = vld [vmem:[#allocation5 + $0x20] sm:$0xff]
        %v304 = vld [vmem:[#allocation5 + $0x28] sm:$0xff]
        %v305 = vld [vmem:[#allocation5 + $0x30] sm:$0xff]
        %v306 = vld [vmem:[#allocation5 + $0x38] sm:$0xff]
        %v307 = vld [vmem:[#allocation5 + $0x40] sm:$0xff]
        %v308 = vld [vmem:[#allocation5 + $0x48] sm:$0xff]
        %v309 = vld [vmem:[#allocation5 + $0x50] sm:$0xff]
        %v310 = vld [vmem:[#allocation5 + $0x58] sm:$0xff]
        %v311 = vld [vmem:[#allocation5 + $0x60] sm:$0xff]
        %v312 = vld [vmem:[#allocation5 + $0x68] sm:$0xff]
        %v313 = vld [vmem:[#allocation5 + $0x70] sm:$0xff]
        %v314 = vld [vmem:[#allocation5 + $0x78] sm:$0xff]
        %v315 = vld [vmem:[#allocation5 + $0x80] sm:$0xff]
        %v316 = vld [vmem:[#allocation5 + $0x88] sm:$0xff]
        %v317 = vld [vmem:[#allocation5 + $0x90] sm:$0xff]
        %v318 = vld [vmem:[#allocation5 + $0x98] sm:$0xff]
        %v319 = vld [vmem:[#allocation5 + $0xa0] sm:$0xff]
        %v320 = vld [vmem:[#allocation5 + $0xa8] sm:$0xff]
        %v321 = vld [vmem:[#allocation5 + $0xb0] sm:$0xff]
        %v322 = vld [vmem:[#allocation5 + $0xb8] sm:$0xff]
        %v323 = vld [vmem:[#allocation5 + $0xc0] sm:$0xff]
        %v324 = vld [vmem:[#allocation5 + $0xc8] sm:$0xff]
        %v325 = vld [vmem:[#allocation5 + $0xd0] sm:$0xff]
        %v326 = vld [vmem:[#allocation5 + $0xd8] sm:$0xff]
        %v327 = vld [vmem:[#allocation5 + $0xe0] sm:$0xff]
        %v328 = vld [vmem:[#allocation5 + $0xe8] sm:$0xff]
        %v329 = vld [vmem:[#allocation5 + $0xf0] sm:$0xff]
        %v330 = vld [vmem:[#allocation5 + $0xf8] sm:$0xff]
        %v331 = vld [vmem:[%s2] sm:$0xf]
        %v333 = vlaneseq
        %v334 = vshrl.u32 %v333, 7
        %v335 = vsub.s32 0, %v334
        %v336 = vrot.slane %v331, %v335
        %v337 = vlaneseq
        %v338 = vshrl.u32 %v337, 7
        %v339 = vsub.s32 1, %v338
        %v340 = vrot.slane %v331, %v339
        %v341 = vlaneseq
        %v342 = vshrl.u32 %v341, 7
        %v343 = vsub.s32 2, %v342
        %v344 = vrot.slane %v331, %v343
        %v345 = vlaneseq
        %v346 = vshrl.u32 %v345, 7
        %v347 = vsub.s32 3, %v346
        %v348 = vrot.slane %v331, %v347
        %v385 = vunpack.c.l.b16 %v299
        %v386 = vunpack.c.h.b16 %v299
        %v387 = vunpack.c.l.b16 %v300
        %v388 = vunpack.c.h.b16 %v300
        %v389 = vunpack.c.l.b16 %v301
        %v390 = vunpack.c.h.b16 %v301
        %v391 = vunpack.c.l.b16 %v302
        %v392 = vunpack.c.h.b16 %v302
        %v393 = vunpack.c.l.b16 %v303
        %v394 = vunpack.c.h.b16 %v303
        %v395 = vunpack.c.l.b16 %v304
        %v396 = vunpack.c.h.b16 %v304
        %v397 = vunpack.c.l.b16 %v305
        %v398 = vunpack.c.h.b16 %v305
        %v399 = vunpack.c.l.b16 %v306
        %v400 = vunpack.c.h.b16 %v306
        %v401 = vunpack.c.l.b16 %v307
        %v402 = vunpack.c.h.b16 %v307
        %v403 = vunpack.c.l.b16 %v308
        %v404 = vunpack.c.h.b16 %v308
        %v405 = vunpack.c.l.b16 %v309
        %v406 = vunpack.c.h.b16 %v309
        %v407 = vunpack.c.l.b16 %v310
        %v408 = vunpack.c.h.b16 %v310
        %v409 = vunpack.c.l.b16 %v311
        %v410 = vunpack.c.h.b16 %v311
        %v411 = vunpack.c.l.b16 %v312
        %v412 = vunpack.c.h.b16 %v312
        %v413 = vunpack.c.l.b16 %v313
        %v414 = vunpack.c.h.b16 %v313
        %v415 = vunpack.c.l.b16 %v314
        %v416 = vunpack.c.h.b16 %v314
        %v417 = vunpack.c.l.b16 %v315
        %v418 = vunpack.c.h.b16 %v315
        %v419 = vunpack.c.l.b16 %v316
        %v420 = vunpack.c.h.b16 %v316
        %v421 = vunpack.c.l.b16 %v317
        %v422 = vunpack.c.h.b16 %v317
        %v423 = vunpack.c.l.b16 %v318
        %v424 = vunpack.c.h.b16 %v318
        %v425 = vunpack.c.l.b16 %v319
        %v426 = vunpack.c.h.b16 %v319
        %v427 = vunpack.c.l.b16 %v320
        %v428 = vunpack.c.h.b16 %v320
        %v429 = vunpack.c.l.b16 %v321
        %v430 = vunpack.c.h.b16 %v321
        %v431 = vunpack.c.l.b16 %v322
        %v432 = vunpack.c.h.b16 %v322
        %v433 = vunpack.c.l.b16 %v323
        %v434 = vunpack.c.h.b16 %v323
        %v435 = vunpack.c.l.b16 %v324
        %v436 = vunpack.c.h.b16 %v324
        %v437 = vunpack.c.l.b16 %v325
        %v438 = vunpack.c.h.b16 %v325
        %v439 = vunpack.c.l.b16 %v326
        %v440 = vunpack.c.h.b16 %v326
        %v441 = vunpack.c.l.b16 %v327
        %v442 = vunpack.c.h.b16 %v327
        %v443 = vunpack.c.l.b16 %v328
        %v444 = vunpack.c.h.b16 %v328
        %v445 = vunpack.c.l.b16 %v329
        %v446 = vunpack.c.h.b16 %v329
        %v447 = vunpack.c.l.b16 %v330
        %v448 = vunpack.c.h.b16 %v330
        %v449 = vpack.c.b16 %v389, %v385
        %v450 = vpack.c.b16 %v390, %v386
        %v451 = vpack.c.b16 %v391, %v387
        %v452 = vpack.c.b16 %v392, %v388
        %v453 = vpack.c.b16 %v397, %v393
        %v454 = vpack.c.b16 %v398, %v394
        %v455 = vpack.c.b16 %v399, %v395
        %v456 = vpack.c.b16 %v400, %v396
        %v457 = vpack.c.b16 %v405, %v401
        %v458 = vpack.c.b16 %v406, %v402
        %v459 = vpack.c.b16 %v407, %v403
        %v460 = vpack.c.b16 %v408, %v404
        %v461 = vpack.c.b16 %v413, %v409
        %v462 = vpack.c.b16 %v414, %v410
        %v463 = vpack.c.b16 %v415, %v411
        %v464 = vpack.c.b16 %v416, %v412
        %v465 = vpack.c.b16 %v421, %v417
        %v466 = vpack.c.b16 %v422, %v418
        %v467 = vpack.c.b16 %v423, %v419
        %v468 = vpack.c.b16 %v424, %v420
        %v469 = vpack.c.b16 %v429, %v425
        %v470 = vpack.c.b16 %v430, %v426
        %v471 = vpack.c.b16 %v431, %v427
        %v472 = vpack.c.b16 %v432, %v428
        %v473 = vpack.c.b16 %v437, %v433
        %v474 = vpack.c.b16 %v438, %v434
        %v475 = vpack.c.b16 %v439, %v435
        %v476 = vpack.c.b16 %v440, %v436
        %v477 = vpack.c.b16 %v445, %v441
        %v478 = vpack.c.b16 %v446, %v442
        %v479 = vpack.c.b16 %v447, %v443
        %v480 = vpack.c.b16 %v448, %v444
        %513 = vmatprep.subr.bf16.mxu0 %v450
        %514 = vmatpush1.bf16.msra.mxu0 %v449
        %515 = vmatprep.subr.bf16.mxu0 %v454
        %516 = vmatpush1.bf16.msra.mxu0 %v453
        %517 = vmatprep.subr.bf16.mxu0 %v458
        %518 = vmatpush1.bf16.msra.mxu0 %v457
        %519 = vmatprep.subr.bf16.mxu0 %v462
        %520 = vmatpush1.bf16.msra.mxu0 %v461
        %521 = vmatprep.subr.bf16.mxu0 %v466
        %522 = vmatpush1.bf16.msra.mxu0 %v465
        %523 = vmatprep.subr.bf16.mxu0 %v470
        %524 = vmatpush1.bf16.msra.mxu0 %v469
        %525 = vmatprep.subr.bf16.mxu0 %v474
        %526 = vmatpush1.bf16.msra.mxu0 %v473
        %527 = vmatprep.subr.bf16.mxu0 %v478
        %528 = vmatpush1.bf16.msra.mxu0 %v477
        %529 = vmatprep.subr.bf16.mxu0 0
        %530 = vmatpush1.bf16.msra.mxu0 0
        %531 = vmatprep.subr.bf16.mxu0 0
        %532 = vmatpush1.bf16.msra.mxu0 0
        %533 = vmatprep.subr.bf16.mxu0 0
        %534 = vmatpush1.bf16.msra.mxu0 0
        %535 = vmatprep.subr.bf16.mxu0 0
        %536 = vmatpush1.bf16.msra.mxu0 0
        %537 = vmatprep.subr.bf16.mxu0 0
        %538 = vmatpush1.bf16.msra.mxu0 0
        %539 = vmatprep.subr.bf16.mxu0 0
        %540 = vmatpush1.bf16.msra.mxu0 0
        %541 = vmatprep.subr.bf16.mxu0 0
        %542 = vmatpush1.bf16.msra.mxu0 0
        %543 = vmatprep.subr.bf16.mxu0 0
        %544 = vmatpush1.bf16.msra.mxu0 0
        %545 = vmatprep.mubr.bf16.mxu0 0
        %546 = vmatmul.mubr.bf16.gmra.mrb[0].mxu0 %v298
        %v547 = vpop.f32.mrb[0].mxu0
        %v548 = vadd.f32 %v336, %v547
        %v549 = vpop.f32.mrb[0].mxu0
        %v550 = vadd.f32 %v340, %v549
        %v551 = vpop.f32.mrb[0].mxu0
        %v552 = vpop.f32.mrb[0].mxu0
        %553 = vdwg.mxu0
        %554 = vmatprep.subr.bf16.mxu0 %v452
        %555 = vmatpush1.bf16.msra.mxu0 %v451
        %556 = vmatprep.subr.bf16.mxu0 %v456
        %557 = vmatpush1.bf16.msra.mxu0 %v455
        %558 = vmatprep.subr.bf16.mxu0 %v460
        %559 = vmatpush1.bf16.msra.mxu0 %v459
        %560 = vmatprep.subr.bf16.mxu0 %v464
        %561 = vmatpush1.bf16.msra.mxu0 %v463
        %562 = vmatprep.subr.bf16.mxu0 %v468
        %563 = vmatpush1.bf16.msra.mxu0 %v467
        %564 = vmatprep.subr.bf16.mxu0 %v472
        %565 = vmatpush1.bf16.msra.mxu0 %v471
        %566 = vmatprep.subr.bf16.mxu0 %v476
        %567 = vmatpush1.bf16.msra.mxu0 %v475
        %568 = vmatprep.subr.bf16.mxu0 %v480
        %569 = vmatpush1.bf16.msra.mxu0 %v479
        %570 = vmatprep.subr.bf16.mxu0 0
        %571 = vmatpush1.bf16.msra.mxu0 0
        %572 = vmatprep.subr.bf16.mxu0 0
        %573 = vmatpush1.bf16.msra.mxu0 0
        %574 = vmatprep.subr.bf16.mxu0 0
        %575 = vmatpush1.bf16.msra.mxu0 0
        %576 = vmatprep.subr.bf16.mxu0 0
        %577 = vmatpush1.bf16.msra.mxu0 0
        %578 = vmatprep.subr.bf16.mxu0 0
        %579 = vmatpush1.bf16.msra.mxu0 0
        %580 = vmatprep.subr.bf16.mxu0 0
        %581 = vmatpush1.bf16.msra.mxu0 0
        %582 = vmatprep.subr.bf16.mxu0 0
        %583 = vmatpush1.bf16.msra.mxu0 0
        %584 = vmatprep.subr.bf16.mxu0 0
        %585 = vmatpush1.bf16.msra.mxu0 0
        %586 = vmatprep.mubr.bf16.mxu0 0
        %587 = vmatmul.mubr.bf16.gmra.mrb[0].mxu0 %v298
        %v588 = vpop.f32.mrb[0].mxu0
        %v589 = vadd.f32 %v344, %v588
        %v590 = vpop.f32.mrb[0].mxu0
        %v591 = vadd.f32 %v348, %v590
        %v592 = vpop.f32.mrb[0].mxu0
        %v593 = vpop.f32.mrb[0].mxu0
        %594 = vdwg.mxu0
        %v595 = vmul.f32 %v548, %v548
        %v596 = vmul.f32 %v550, %v550
        %v597 = vadd.f32 %v595, %v596
        %v598 = vmul.f32 %v589, %v589
        %v599 = vadd.f32 %v597, %v598
        %v600 = vmul.f32 %v591, %v591
        %v601 = vadd.f32 %v599, %v600
        %v602 = vadd.f32 %v601, 1e-12
        %v603 = vrsqrt.pop %v602
        %v604 = vmul.f32 %v601, %v603
        %v605 = vld [vmem:[%s3] sm:$0x1]
        %v607 = vlaneseq
        %v608 = vshrl.u32 %v607, 7
        %v609 = vsub.s32 0, %v608
        %v610 = vrot.slane %v605, %v609
        %v612 = vadd.f32 %v604, %v610
        %v613 = vmax.f32 %v612, 0.0
        %v614 = vmul.f32 %v613, %v603
        %v615 = vmul.f32 %v548, %v614
        %v616 = vpack.c.bf16 %v615, %v615
        %v617 = vmul.f32 %v550, %v614
        %v618 = vpack.c.bf16 %v617, %v617
        %v619 = vmul.f32 %v589, %v614
        %v620 = vpack.c.bf16 %v619, %v619
        %v621 = vmul.f32 %v591, %v614
        %v622 = vpack.c.bf16 %v621, %v621
        %v623 = vld [vmem:[#allocation7] sm:$0xf]
        %v624 = vld [vmem:[#allocation7 + $0x4] sm:$0xf]
        %v625 = vld [vmem:[#allocation7 + $0x8] sm:$0xf]
        %v626 = vld [vmem:[#allocation7 + $0xc] sm:$0xf]
        %v627 = vld [vmem:[#allocation7 + $0x10] sm:$0xf]
        %v628 = vld [vmem:[#allocation7 + $0x14] sm:$0xf]
        %v629 = vld [vmem:[#allocation7 + $0x18] sm:$0xf]
        %v630 = vld [vmem:[#allocation7 + $0x1c] sm:$0xf]
        %v631 = vld [vmem:[#allocation7 + $0x20] sm:$0xf]
        %v632 = vld [vmem:[#allocation7 + $0x24] sm:$0xf]
        %v633 = vld [vmem:[#allocation7 + $0x28] sm:$0xf]
        %v634 = vld [vmem:[#allocation7 + $0x2c] sm:$0xf]
        %v635 = vld [vmem:[#allocation7 + $0x30] sm:$0xf]
        %v636 = vld [vmem:[#allocation7 + $0x34] sm:$0xf]
        %v637 = vld [vmem:[#allocation7 + $0x38] sm:$0xf]
        %v638 = vld [vmem:[#allocation7 + $0x3c] sm:$0xf]
        %v639 = vld [vmem:[#allocation7 + $0x40] sm:$0xf]
        %v640 = vld [vmem:[#allocation7 + $0x44] sm:$0xf]
        %v641 = vld [vmem:[#allocation7 + $0x48] sm:$0xf]
        %v642 = vld [vmem:[#allocation7 + $0x4c] sm:$0xf]
        %v643 = vld [vmem:[#allocation7 + $0x50] sm:$0xf]
        %v644 = vld [vmem:[#allocation7 + $0x54] sm:$0xf]
        %v645 = vld [vmem:[#allocation7 + $0x58] sm:$0xf]
        %v646 = vld [vmem:[#allocation7 + $0x5c] sm:$0xf]
        %v647 = vld [vmem:[#allocation7 + $0x60] sm:$0xf]
        %v648 = vld [vmem:[#allocation7 + $0x64] sm:$0xf]
        %v649 = vld [vmem:[#allocation7 + $0x68] sm:$0xf]
        %v650 = vld [vmem:[#allocation7 + $0x6c] sm:$0xf]
        %v651 = vld [vmem:[#allocation7 + $0x70] sm:$0xf]
        %v652 = vld [vmem:[#allocation7 + $0x74] sm:$0xf]
        %v653 = vld [vmem:[#allocation7 + $0x78] sm:$0xf]
        %v654 = vld [vmem:[#allocation7 + $0x7c] sm:$0xf]
        %v655 = vld [vmem:[#allocation7 + $0x80] sm:$0xf]
        %v656 = vld [vmem:[#allocation7 + $0x84] sm:$0xf]
        %v657 = vld [vmem:[#allocation7 + $0x88] sm:$0xf]
        %v658 = vld [vmem:[#allocation7 + $0x8c] sm:$0xf]
        %v659 = vld [vmem:[#allocation7 + $0x90] sm:$0xf]
        %v660 = vld [vmem:[#allocation7 + $0x94] sm:$0xf]
        %v661 = vld [vmem:[#allocation7 + $0x98] sm:$0xf]
        %v662 = vld [vmem:[#allocation7 + $0x9c] sm:$0xf]
        %v663 = vld [vmem:[#allocation7 + $0xa0] sm:$0xf]
        %v664 = vld [vmem:[#allocation7 + $0xa4] sm:$0xf]
        %v665 = vld [vmem:[#allocation7 + $0xa8] sm:$0xf]
        %v666 = vld [vmem:[#allocation7 + $0xac] sm:$0xf]
        %v667 = vld [vmem:[#allocation7 + $0xb0] sm:$0xf]
        %v668 = vld [vmem:[#allocation7 + $0xb4] sm:$0xf]
        %v669 = vld [vmem:[#allocation7 + $0xb8] sm:$0xf]
        %v670 = vld [vmem:[#allocation7 + $0xbc] sm:$0xf]
        %v671 = vld [vmem:[#allocation7 + $0xc0] sm:$0xf]
        %v672 = vld [vmem:[#allocation7 + $0xc4] sm:$0xf]
        %v673 = vld [vmem:[#allocation7 + $0xc8] sm:$0xf]
        %v674 = vld [vmem:[#allocation7 + $0xcc] sm:$0xf]
        %v675 = vld [vmem:[#allocation7 + $0xd0] sm:$0xf]
        %v676 = vld [vmem:[#allocation7 + $0xd4] sm:$0xf]
        %v677 = vld [vmem:[#allocation7 + $0xd8] sm:$0xf]
        %v678 = vld [vmem:[#allocation7 + $0xdc] sm:$0xf]
        %v679 = vld [vmem:[#allocation7 + $0xe0] sm:$0xf]
        %v680 = vld [vmem:[#allocation7 + $0xe4] sm:$0xf]
        %v681 = vld [vmem:[#allocation7 + $0xe8] sm:$0xf]
        %v682 = vld [vmem:[#allocation7 + $0xec] sm:$0xf]
        %v683 = vld [vmem:[#allocation7 + $0xf0] sm:$0xf]
        %v684 = vld [vmem:[#allocation7 + $0xf4] sm:$0xf]
        %v685 = vld [vmem:[#allocation7 + $0xf8] sm:$0xf]
        %v686 = vld [vmem:[#allocation7 + $0xfc] sm:$0xf]
        %v687 = vld [vmem:[%s5] sm:$0x1]
        %v689 = vlaneseq
        %v690 = vshrl.u32 %v689, 7
        %v691 = vsub.s32 0, %v690
        %v692 = vrot.slane %v687, %v691
        %v758 = vunpack.c.l.b16 %v623
        %v759 = vunpack.c.l.b16 %v624
        %v760 = vunpack.c.l.b16 %v625
        %v761 = vunpack.c.l.b16 %v626
        %v762 = vunpack.c.l.b16 %v627
        %v763 = vunpack.c.l.b16 %v628
        %v764 = vunpack.c.l.b16 %v629
        %v765 = vunpack.c.l.b16 %v630
        %v766 = vunpack.c.l.b16 %v631
        %v767 = vunpack.c.l.b16 %v632
        %v768 = vunpack.c.l.b16 %v633
        %v769 = vunpack.c.l.b16 %v634
        %v770 = vunpack.c.l.b16 %v635
        %v771 = vunpack.c.l.b16 %v636
        %v772 = vunpack.c.l.b16 %v637
        %v773 = vunpack.c.l.b16 %v638
        %v774 = vunpack.c.l.b16 %v639
        %v775 = vunpack.c.l.b16 %v640
        %v776 = vunpack.c.l.b16 %v641
        %v777 = vunpack.c.l.b16 %v642
        %v778 = vunpack.c.l.b16 %v643
        %v779 = vunpack.c.l.b16 %v644
        %v780 = vunpack.c.l.b16 %v645
        %v781 = vunpack.c.l.b16 %v646
        %v782 = vunpack.c.l.b16 %v647
        %v783 = vunpack.c.l.b16 %v648
        %v784 = vunpack.c.l.b16 %v649
        %v785 = vunpack.c.l.b16 %v650
        %v786 = vunpack.c.l.b16 %v651
        %v787 = vunpack.c.l.b16 %v652
        %v788 = vunpack.c.l.b16 %v653
        %v789 = vunpack.c.l.b16 %v654
        %v790 = vunpack.c.l.b16 %v655
        %v791 = vunpack.c.l.b16 %v656
        %v792 = vunpack.c.l.b16 %v657
        %v793 = vunpack.c.l.b16 %v658
        %v794 = vunpack.c.l.b16 %v659
        %v795 = vunpack.c.l.b16 %v660
        %v796 = vunpack.c.l.b16 %v661
        %v797 = vunpack.c.l.b16 %v662
        %v798 = vunpack.c.l.b16 %v663
        %v799 = vunpack.c.l.b16 %v664
        %v800 = vunpack.c.l.b16 %v665
        %v801 = vunpack.c.l.b16 %v666
        %v802 = vunpack.c.l.b16 %v667
        %v803 = vunpack.c.l.b16 %v668
        %v804 = vunpack.c.l.b16 %v669
        %v805 = vunpack.c.l.b16 %v670
        %v806 = vunpack.c.l.b16 %v671
        %v807 = vunpack.c.l.b16 %v672
        %v808 = vunpack.c.l.b16 %v673
        %v809 = vunpack.c.l.b16 %v674
        %v810 = vunpack.c.l.b16 %v675
        %v811 = vunpack.c.l.b16 %v676
        %v812 = vunpack.c.l.b16 %v677
        %v813 = vunpack.c.l.b16 %v678
        %v814 = vunpack.c.l.b16 %v679
        %v815 = vunpack.c.l.b16 %v680
        %v816 = vunpack.c.l.b16 %v681
        %v817 = vunpack.c.l.b16 %v682
        %v818 = vunpack.c.l.b16 %v683
        %v819 = vunpack.c.l.b16 %v684
        %v820 = vunpack.c.l.b16 %v685
        %v821 = vunpack.c.l.b16 %v686
        %v822 = vpack.c.b16 %v759, %v758
        %v823 = vpack.c.b16 %v761, %v760
        %v824 = vpack.c.b16 %v763, %v762
        %v825 = vpack.c.b16 %v765, %v764
        %v826 = vpack.c.b16 %v767, %v766
        %v827 = vpack.c.b16 %v769, %v768
        %v828 = vpack.c.b16 %v771, %v770
        %v829 = vpack.c.b16 %v773, %v772
        %v830 = vpack.c.b16 %v775, %v774
        %v831 = vpack.c.b16 %v777, %v776
        %v832 = vpack.c.b16 %v779, %v778
        %v833 = vpack.c.b16 %v781, %v780
        %v834 = vpack.c.b16 %v783, %v782
        %v835 = vpack.c.b16 %v785, %v784
        %v836 = vpack.c.b16 %v787, %v786
        %v837 = vpack.c.b16 %v789, %v788
        %v838 = vpack.c.b16 %v791, %v790
        %v839 = vpack.c.b16 %v793, %v792
        %v840 = vpack.c.b16 %v795, %v794
        %v841 = vpack.c.b16 %v797, %v796
        %v842 = vpack.c.b16 %v799, %v798
        %v843 = vpack.c.b16 %v801, %v800
        %v844 = vpack.c.b16 %v803, %v802
        %v845 = vpack.c.b16 %v805, %v804
        %v846 = vpack.c.b16 %v807, %v806
        %v847 = vpack.c.b16 %v809, %v808
        %v848 = vpack.c.b16 %v811, %v810
        %v849 = vpack.c.b16 %v813, %v812
        %v850 = vpack.c.b16 %v815, %v814
        %v851 = vpack.c.b16 %v817, %v816
        %v852 = vpack.c.b16 %v819, %v818
        %v853 = vpack.c.b16 %v821, %v820
        %886 = vmatprep.subr.bf16.mxu0 0
        %887 = vmatpush1.bf16.msra.mxu0 %v822
        %888 = vmatprep.subr.bf16.mxu0 0
        %889 = vmatpush1.bf16.msra.mxu0 %v823
        %890 = vmatprep.subr.bf16.mxu0 0
        %891 = vmatpush1.bf16.msra.mxu0 %v824
        %892 = vmatprep.subr.bf16.mxu0 0
        %893 = vmatpush1.bf16.msra.mxu0 %v825
        %894 = vmatprep.subr.bf16.mxu0 0
        %895 = vmatpush1.bf16.msra.mxu0 %v826
        %896 = vmatprep.subr.bf16.mxu0 0
        %897 = vmatpush1.bf16.msra.mxu0 %v827
        %898 = vmatprep.subr.bf16.mxu0 0
        %899 = vmatpush1.bf16.msra.mxu0 %v828
        %900 = vmatprep.subr.bf16.mxu0 0
        %901 = vmatpush1.bf16.msra.mxu0 %v829
        %902 = vmatprep.subr.bf16.mxu0 0
        %903 = vmatpush1.bf16.msra.mxu0 %v830
        %904 = vmatprep.subr.bf16.mxu0 0
        %905 = vmatpush1.bf16.msra.mxu0 %v831
        %906 = vmatprep.subr.bf16.mxu0 0
        %907 = vmatpush1.bf16.msra.mxu0 %v832
        %908 = vmatprep.subr.bf16.mxu0 0
        %909 = vmatpush1.bf16.msra.mxu0 %v833
        %910 = vmatprep.subr.bf16.mxu0 0
        %911 = vmatpush1.bf16.msra.mxu0 %v834
        %912 = vmatprep.subr.bf16.mxu0 0
        %913 = vmatpush1.bf16.msra.mxu0 %v835
        %914 = vmatprep.subr.bf16.mxu0 0
        %915 = vmatpush1.bf16.msra.mxu0 %v836
        %916 = vmatprep.subr.bf16.mxu0 0
        %917 = vmatpush1.bf16.msra.mxu0 %v837
        %918 = vmatprep.mubr.bf16.mxu0 %v618
        %919 = vmatmul.mubr.bf16.gmra.mrb[0].mxu0 %v616
        %v920 = vpop.f32.mrb[0].mxu0
        %v921 = vadd.f32 %v692, %v920
        %v922 = vpop.f32.mrb[0].mxu0
        %v923 = vpop.f32.mrb[0].mxu0
        %v924 = vpop.f32.mrb[0].mxu0
        %925 = vdwg.mxu0
        %926 = vmatprep.subr.bf16.mxu0 0
        %927 = vmatpush1.bf16.msra.mxu0 %v838
        %928 = vmatprep.subr.bf16.mxu0 0
        %929 = vmatpush1.bf16.msra.mxu0 %v839
        %930 = vmatprep.subr.bf16.mxu0 0
        %931 = vmatpush1.bf16.msra.mxu0 %v840
        %932 = vmatprep.subr.bf16.mxu0 0
        %933 = vmatpush1.bf16.msra.mxu0 %v841
        %934 = vmatprep.subr.bf16.mxu0 0
        %935 = vmatpush1.bf16.msra.mxu0 %v842
        %936 = vmatprep.subr.bf16.mxu0 0
        %937 = vmatpush1.bf16.msra.mxu0 %v843
        %938 = vmatprep.subr.bf16.mxu0 0
        %939 = vmatpush1.bf16.msra.mxu0 %v844
        %940 = vmatprep.subr.bf16.mxu0 0
        %941 = vmatpush1.bf16.msra.mxu0 %v845
        %942 = vmatprep.subr.bf16.mxu0 0
        %943 = vmatpush1.bf16.msra.mxu0 %v846
        %944 = vmatprep.subr.bf16.mxu0 0
        %945 = vmatpush1.bf16.msra.mxu0 %v847
        %946 = vmatprep.subr.bf16.mxu0 0
        %947 = vmatpush1.bf16.msra.mxu0 %v848
        %948 = vmatprep.subr.bf16.mxu0 0
        %949 = vmatpush1.bf16.msra.mxu0 %v849
        %950 = vmatprep.subr.bf16.mxu0 0
        %951 = vmatpush1.bf16.msra.mxu0 %v850
        %952 = vmatprep.subr.bf16.mxu0 0
        %953 = vmatpush1.bf16.msra.mxu0 %v851
        %954 = vmatprep.subr.bf16.mxu0 0
        %955 = vmatpush1.bf16.msra.mxu0 %v852
        %956 = vmatprep.subr.bf16.mxu0 0
        %957 = vmatpush1.bf16.msra.mxu0 %v853
        %958 = vmatprep.mubr.bf16.mxu0 %v622
        %959 = vmatmul.mubr.bf16.gmra.mrb[0].mxu0 %v620
        %v960 = vpop.f32.mrb[0].mxu0
        %v961 = vadd.f32 %v921, %v960
        %v962 = vpop.f32.mrb[0].mxu0
        %v963 = vpop.f32.mrb[0].mxu0
        %v964 = vpop.f32.mrb[0].mxu0
        %965 = vdwg.mxu0
        %966 = vst [vmem:[%s295] sm:$0xff] %v961
        %s967 = sand.u32 %s163, 1
        %s968 = scalar_lea.sflag [#allocation4], %s967
        %s969 = sand.u32 %s163, 1
        %s970 = smul.addr %s969, 8
        %s971 = scalar_lea.vmem [#allocation8], %s970
        // Predicated region
        $region57: #{tpu_custom_call.1} parent=43 // pred_check
          %p972 = pneg %p173
        $region58: #{tpu_custom_call.1} parent=43 // pred_check_branch
          %974 = sbr.rel (%p972) target = $region60
        $region59: #{tpu_custom_call.1} parent=43 // pred_region
          %s976 = ssub.s32 128, 128
          %977 = vsyncadd %s968, %s976
          %s978 = smul.addr %s24, 128
          %s979 = scalar_lea.hbm %s6, %s978
          %s981 = sshll.u32 %s971, 4
          %s982 = int_to_ptr.vmem [resolvable:$true] %s981
          %984 = dma.vmem_to_hbm [thread:$0]  %s982, 128, %s979, %s968
        $region60: #{tpu_custom_call.1} parent=43 // pred_fallthru
          _
      $region44: #{tpu_custom_call.1} parent=5 // pred_fallthru
        _
      %p985 = scmp.le.s32.totalorder 2, %s19
      // Predicated region
      $region61: #{tpu_custom_call.1} parent=5 // pred_check
        %p986 = pneg %p985
      $region62: #{tpu_custom_call.1} parent=5 // pred_check_branch
        %988 = sbr.rel (%p986) target = $region64
      $region63: #{tpu_custom_call.1} parent=5 // pred_region
        %s989 = ssub.s32 %s19, 2
        // Predicated region
        $region65: #{tpu_custom_call.1} parent=63 // pred_check
          %p990 = pneg %p179
        $region66: #{tpu_custom_call.1} parent=63 // pred_check_branch
          %992 = sbr.rel (%p990) target = $region68
        $region67: #{tpu_custom_call.1} parent=63 // pred_region
          %s993 = sand.u32 %s164, 1
          %s994 = scalar_lea.sflag [#allocation4], %s993
          %s995 = sand.u32 %s164, 1
          %s996 = smul.addr %s995, 8
          %s997 = scalar_lea.vmem [#allocation8], %s996
          %998 = dma.done %s994, 128
        $region68: #{tpu_custom_call.1} parent=63 // pred_fallthru
          _
      $region64: #{tpu_custom_call.1} parent=5 // pred_fallthru
        _
    $region6: #{tpu_custom_call.1} parent=1 // loop_footer
      %s23 = sadd.s32 1, %s19
    $region7: #{tpu_custom_call.1} parent=1 // loop_footer_branch
      %18 = sbr.rel target = $region3
    $region8: #{tpu_custom_call.1} parent=1 // loop_exit
      _
    %999 = vsyncpa [#allocation3], 1
    %s1000 = scalar_lea.sflag [#allocation3], 1
    %1001 = vsyncpa %s1000, 1
    %1002 = vsyncpa [#allocation6], 1
    %1003 = vsyncpa [#allocation4], 1
    %s1004 = scalar_lea.sflag [#allocation4], 1
    %1005 = vsyncpa %s1004, 1

</llo_original>
